<compile_context>
chip_gen: v7x
topology: tpu7x:2x2x1
jax: 0.10.0
libtpu: 0.0.40
codegen_flags: <defaults>
</compile_context>

<pallas_src>
import numpy as np
import jax
import jax.numpy as jnp
from jax.experimental import pallas as pl
from jax.experimental.pallas import tpu as pltpu

_VMEM_LIMIT = 64 * 1024 * 1024


def _round_up(x, m):
    return (x + m - 1) // m * m


def _pick_row_tile(n, max_tile=256):
    # largest multiple of 8 that divides n and is <= max_tile (n is a multiple of 8 here)
    t = max(min(max_tile, n) // 8 * 8, 8)
    while n % t:
        t -= 8
    return t


def _pick_col_tile(c, max_tile=512):
    # largest multiple of 128 that divides c and is <= max_tile (c is a multiple of 128)
    t = max(min(max_tile, c) // 128 * 128, 128)
    while c % t:
        t -= 128
    return t


# --------------------------------------------------------------------------------------
# Row+column tiled projection kernels (input gates x @ W_ih + b for both directions).
#   single-input : layer 0 (embedding input)
#   two-input    : layers > 0 (out_f @ W_top + out_b @ W_bot + b) -- replaces the
#                  inter-layer concat, removing an HBM round trip of the (T,B,2H) tensor.
# --------------------------------------------------------------------------------------
def _matmul_bias_kernel(x_ref, w_ref, b_ref, o_ref):
    acc = jnp.dot(x_ref[...], w_ref[...], preferred_element_type=jnp.float32)
    o_ref[...] = (acc + b_ref[...]).astype(o_ref.dtype)


def matmul_bias(x2d, w, b, *, out_dtype=jnp.bfloat16, row_tile=256, col_tile=512):
    n, d = x2d.shape
    c = w.shape[1]
    tn = _pick_row_tile(n, row_tile)
    cn = _pick_col_tile(c, col_tile)
    return pl.pallas_call(
        _matmul_bias_kernel,
        out_shape=jax.ShapeDtypeStruct((n, c), out_dtype),
        grid=(n // tn, c // cn),
        in_specs=[
            pl.BlockSpec((tn, d), lambda i, j: (i, 0)),
            pl.BlockSpec((d, cn), lambda i, j: (0, j)),
            pl.BlockSpec((1, cn), lambda i, j: (0, j)),
        ],
        out_specs=pl.BlockSpec((tn, cn), lambda i, j: (i, j)),
        compiler_params=pltpu.CompilerParams(
            dimension_semantics=("parallel", "parallel"),
            vmem_limit_bytes=_VMEM_LIMIT,
        ),
    )(x2d, w, b)


def _matmul2_bias_kernel(a_ref, b_ref, wa_ref, wb_ref, bias_ref, o_ref):
    acc = jnp.dot(a_ref[...], wa_ref[...], preferred_element_type=jnp.float32)
    acc = acc + jnp.dot(b_ref[...], wb_ref[...], preferred_element_type=jnp.float32)
    o_ref[...] = (acc + bias_ref[...]).astype(o_ref.dtype)


def matmul2_bias(a2d, b2d, wa, wb, bias, *, out_dtype=jnp.bfloat16,
                 row_tile=256, col_tile=512):
    n, da = a2d.shape
    db = b2d.shape[1]
    c = wa.shape[1]
    tn = _pick_row_tile(n, row_tile)
    cn = _pick_col_tile(c, col_tile)
    return pl.pallas_call(
        _matmul2_bias_kernel,
        out_shape=jax.ShapeDtypeStruct((n, c), out_dtype),
        grid=(n // tn, c // cn),
        in_specs=[
            pl.BlockSpec((tn, da), lambda i, j: (i, 0)),
            pl.BlockSpec((tn, db), lambda i, j: (i, 0)),
            pl.BlockSpec((da, cn), lambda i, j: (0, j)),
            pl.BlockSpec((db, cn), lambda i, j: (0, j)),
            pl.BlockSpec((1, cn), lambda i, j: (0, j)),
        ],
        out_specs=pl.BlockSpec((tn, cn), lambda i, j: (i, j)),
        compiler_params=pltpu.CompilerParams(
            dimension_semantics=("parallel", "parallel"),
            vmem_limit_bytes=_VMEM_LIMIT,
        ),
    )(a2d, b2d, wa, wb, bias)


# --------------------------------------------------------------------------------------
# Fused bidirectional GRU recurrence kernel.
#   grid = (num_time_chunks,)   (sequential; hidden state carried in VMEM scratch)
#   grid step c: fwd direction owns time chunk c, bwd direction owns chunk nc-1-c.
#   A single fori_loop interleaves fwd step i and bwd step tc-1-i so the two independent
#   (B,H)@(H,3H) chains overlap; unroll capped at 8.
#   The fwd/bwd halves of the projected gates are selected by the BlockSpec (the same
#   (t_pad, B, 6H) array is passed twice with last-dim block 0 / 1).
# --------------------------------------------------------------------------------------
def _bigru_recurrence_kernel(
    lens_ref,               # (B, 1) int32, constant block
    ginf_ref, ginb_ref,     # (Tc, B, 3H) bf16: precomputed x @ W_ih + b_ih per direction
    whf_ref, whb_ref,       # (H, 3H) bf16 recurrent weights (gates r|z|n fused)
    bhf_ref, bhb_ref,       # (1, 3H) f32 recurrent biases
    outf_ref, outb_ref,     # (Tc, B, H) bf16 per-direction outputs
    hf_scr, hb_scr,         # (B, H) f32 hidden-state scratch, persists across grid steps
):
    c = pl.program_id(0)
    nc = pl.num_programs(0)
    tc, _, h3 = ginf_ref.shape
    h_dim = h3 // 3

    @pl.when(c == 0)
    def _():
        hf_scr[...] = jnp.zeros_like(hf_scr)
        hb_scr[...] = jnp.zeros_like(hb_scr)

    lens = lens_ref[...]  # (B, 1) int32

    def gru_cell(g_in, h, w_hh_ref, b_hh_ref, t_global):
        # PyTorch GRU cell, gate order (r, z, n); b_hn stays inside the r-gated term.
        # MXU operands in bf16, accumulation + gate math in f32.
        g_h = jnp.dot(h.astype(w_hh_ref.dtype), w_hh_ref[...],
                      preferred_element_type=jnp.float32) + b_hh_ref[...]
        g_in = g_in.astype(jnp.float32)
        r = jax.nn.sigmoid(g_in[:, 0:h_dim] + g_h[:, 0:h_dim])
        z = jax.nn.sigmoid(g_in[:, h_dim:2 * h_dim] + g_h[:, h_dim:2 * h_dim])
        n = jnp.tanh(g_in[:, 2 * h_dim:] + r * g_h[:, 2 * h_dim:])
        h_new = n + z * (h - n)                  # == (1 - z) * n + z * h
        mask = t_global < lens                   # (B, 1) bool: packed-sequence validity
        h_next = jnp.where(mask, h_new, h)       # advance only inside the sequence
        out = jnp.where(mask, h_new, -1.0)       # pad_packed padding_value = -1
        return h_next, out

    t0_f = c * tc                 # fwd: global time [c*Tc, c*Tc + Tc), ascending
    t0_b = (nc - 1 - c) * tc      # bwd: global time [(nc-1-c)*Tc, ...), descending

    def body(i, carry):
        h_f, h_b = carry
        j = tc - 1 - i
        h_f, out_f = gru_cell(ginf_ref[i], h_f, whf_ref, bhf_ref, t0_f + i)
        outf_ref[i] = out_f.astype(outf_ref.dtype)
        h_b, out_b = gru_cell(ginb_ref[j], h_b, whb_ref, bhb_ref, t0_b + j)
        outb_ref[j] = out_b.astype(outb_ref.dtype)
        return (h_f, h_b)

    h_f, h_b = jax.lax.fori_loop(0, tc, body, (hf_scr[...], hb_scr[...]),
                                 unroll=min(tc, 8))
    hf_scr[...] = h_f
    hb_scr[...] = h_b


def bigru_layer(gin, lens_col, wh_f, bh_f, wh_b, bh_b, *, time_chunk):
    t_pad, b_pad, h6 = gin.shape
    h3 = h6 // 2
    h_pad = h3 // 3
    tc = time_chunk
    nc = t_pad // tc

    out_f, out_b = pl.pallas_call(
        _bigru_recurrence_kernel,
        out_shape=(
            jax.ShapeDtypeStruct((t_pad, b_pad, h_pad), jnp.bfloat16),
            jax.ShapeDtypeStruct((t_pad, b_pad, h_pad), jnp.bfloat16),
        ),
        grid=(nc,),
        in_specs=[
            pl.BlockSpec((b_pad, 1), lambda c: (0, 0)),                    # lengths
            pl.BlockSpec((tc, b_pad, h3), lambda c: (c, 0, 0)),            # fwd gates (col blk 0)
            pl.BlockSpec((tc, b_pad, h3), lambda c: (nc - 1 - c, 0, 1)),   # bwd gates (col blk 1)
            pl.BlockSpec((h_pad, h3), lambda c: (0, 0)),                   # W_hh fwd
            pl.BlockSpec((h_pad, h3), lambda c: (0, 0)),                   # W_hh bwd
            pl.BlockSpec((1, h3), lambda c: (0, 0)),                       # b_hh fwd
            pl.BlockSpec((1, h3), lambda c: (0, 0)),                       # b_hh bwd
        ],
        out_specs=(
            pl.BlockSpec((tc, b_pad, h_pad), lambda c: (c, 0, 0)),
            pl.BlockSpec((tc, b_pad, h_pad), lambda c: (nc - 1 - c, 0, 0)),
        ),
        scratch_shapes=[
            pltpu.VMEM((b_pad, h_pad), jnp.float32),
            pltpu.VMEM((b_pad, h_pad), jnp.float32),
        ],
        compiler_params=pltpu.CompilerParams(
            dimension_semantics=("arbitrary",),
            vmem_limit_bytes=_VMEM_LIMIT,
        ),
    )(lens_col, gin, gin, wh_f, wh_b, bh_f, bh_b)
    return out_f, out_b


# --------------------------------------------------------------------------------------
# Fused two-input linear + log_softmax kernel (dropout == identity at inference).
# Classifier columns are padded to 128 lanes with -1e30 bias so padded logits vanish
# under the softmax; real columns are sliced out afterwards.  Fed time-major so no
# transpose of the big activation is needed.
# --------------------------------------------------------------------------------------
def _linear2_logsoftmax_kernel(a_ref, b_ref, wa_ref, wb_ref, bias_ref, o_ref):
    y = jnp.dot(a_ref[...], wa_ref[...], preferred_element_type=jnp.float32)
    y = y + jnp.dot(b_ref[...], wb_ref[...], preferred_element_type=jnp.float32)
    y = y + bias_ref[...]
    m = jnp.max(y, axis=-1, keepdims=True)
    lse = jnp.log(jnp.sum(jnp.exp(y - m), axis=-1, keepdims=True)) + m
    o_ref[...] = y - lse


def linear2_logsoftmax(a2d, b2d, wa, wb, bias, *, row_tile=256):
    n, da = a2d.shape
    db = b2d.shape[1]
    c = wa.shape[1]
    tn = _pick_row_tile(n, row_tile)
    return pl.pallas_call(
        _linear2_logsoftmax_kernel,
        out_shape=jax.ShapeDtypeStruct((n, c), jnp.float32),
        grid=(n // tn,),
        in_specs=[
            pl.BlockSpec((tn, da), lambda i: (i, 0)),
            pl.BlockSpec((tn, db), lambda i: (i, 0)),
            pl.BlockSpec((da, c), lambda i: (0, 0)),
            pl.BlockSpec((db, c), lambda i: (0, 0)),
            pl.BlockSpec((1, c), lambda i: (0, 0)),
        ],
        out_specs=pl.BlockSpec((tn, c), lambda i: (i, 0)),
        compiler_params=pltpu.CompilerParams(
            dimension_semantics=("parallel",),
            vmem_limit_bytes=_VMEM_LIMIT,
        ),
    )(a2d, b2d, wa, wb, bias)


# --------------------------------------------------------------------------------------
# Full forward pass (concat=False path of the PyTorch module).
# --------------------------------------------------------------------------------------
def bigru_forward(x_ids, params, num_layers, *, time_chunk=32):
    xs = np.asarray(x_ids)
    B, T = xs.shape

    # Length-finding loop copied verbatim from the PyTorch forward, including the
    # `prevZeroPos` value being carried across batch rows (a quirk of the reference
    # that we reproduce exactly).  Runs on concrete host values, so — like the
    # reference module itself — this function is not jit-traceable w.r.t. x.
    prev = T - 1
    lengths = []
    for i in range(B):
        prev -= 1
        while xs[i][prev] == -1:
            prev -= 1
        prev += 1
        lengths.append(prev + 1)

    T_out = int(max(lengths))  # pad_packed_sequence returns max(lengths) time steps

    hidden = params["hidden"]
    num_tags = params["num_tags"]
    h_pad = params["h_pad"]
    b_pad = _round_up(B, 8)

    ids = jnp.where(x_ids == -1, 0, x_ids)                         # x[x == -1] = 0
    ids_tm = ids[:, :T_out].T                                      # (T_out, B), time-major
    x_tm = jnp.take(params["embedding"], ids_tm, axis=0)           # (T_out, B, E) f32

    tc = min(time_chunk, T_out)
    t_pad = _round_up(T_out, tc)
    x_tm = jnp.pad(x_tm, ((0, t_pad - T_out), (0, b_pad - B), (0, 0)))
    x_tm = x_tm.astype(jnp.bfloat16)

    lens_col = jnp.zeros((b_pad, 1), jnp.int32).at[:B, 0].set(
        jnp.asarray(lengths, dtype=jnp.int32))

    n_rows = t_pad * b_pad
    emb_dim = x_tm.shape[-1]
    prev_f = prev_b = None
    for l in range(num_layers):
        layer = params["gru"][l]
        if l == 0:
            gin = matmul_bias(x_tm.reshape(n_rows, emb_dim),
                              layer["w_ih_cat"], layer["b_ih_cat"])
        else:
            gin = matmul2_bias(prev_f.reshape(n_rows, h_pad),
                               prev_b.reshape(n_rows, h_pad),
                               layer["w_ih_top"], layer["w_ih_bot"],
                               layer["b_ih_cat"])
        gin = gin.reshape(t_pad, b_pad, 6 * h_pad)
        prev_f, prev_b = bigru_layer(
            gin, lens_col,
            layer["w_hh_f"], layer["b_hh_f"], layer["w_hh_b"], layer["b_hh_b"],
            time_chunk=tc)

    # Classifier fed time-major (free reshape); transpose only the tiny logits tensor.
    # TODO(synk): dropout(p=0.2) treated as identity (eval mode)
    logp = linear2_logsoftmax(prev_f.reshape(n_rows, h_pad),
                              prev_b.reshape(n_rows, h_pad),
                              params["lin_w_f"], params["lin_w_b"], params["lin_b"])
    logp = logp.reshape(t_pad, b_pad, -1)[:T_out, :B, :num_tags]
    return jnp.transpose(logp, (1, 0, 2))                          # (B, T_out, num_tags)


# --------------------------------------------------------------------------------------
# Parameter construction (natural shapes, gates fused along the last weight dim: r|z|n)
# and preparation (per-gate zero-padding of H to a multiple of 128, bf16 MXU operands).
# Zero padding keeps the padded hidden positions exactly 0, so results are unchanged.
# --------------------------------------------------------------------------------------
def make_params(key, vocab, emb_dim, hidden, num_layers, num_tags):
    keys = iter(jax.random.split(key, 4 + num_layers * 16))
    scale = 1.0 / np.sqrt(hidden)

    def u(shape):
        return jax.random.uniform(next(keys), shape, jnp.float32, -scale, scale)

    params = {
        "embedding": jax.random.normal(next(keys), (vocab, emb_dim), jnp.float32),
        "gru": [],
        "lin_w": u((2 * hidden, num_tags)),
        "lin_b": u((1, num_tags)),
    }
    for l in range(num_layers):
        in_dim = emb_dim if l == 0 else 2 * hidden
        layer = {}
        for d in ("fwd", "bwd"):
            layer[d] = (
                u((in_dim, 3 * hidden)),   # W_ih  (gates r|z|n fused)
                u((hidden, 3 * hidden)),   # W_hh
                u((1, 3 * hidden)),        # b_ih
                u((1, 3 * hidden)),        # b_hh
            )
        params["gru"].append(layer)
    return params


def prepare_params(raw, hidden, num_tags, *, compute_dtype=jnp.bfloat16):
    h_pad = _round_up(hidden, 128)
    c_pad = _round_up(num_tags, 128)

    def pad_gate_cols(w):  # (..., 3H) -> (..., 3*h_pad), zero-pad each gate block
        lead = w.shape[:-1]
        w3 = w.reshape(lead + (3, hidden))
        w3 = jnp.pad(w3, [(0, 0)] * len(lead) + [(0, 0), (0, h_pad - hidden)])
        return w3.reshape(lead + (3 * h_pad,))

    def pad_rows(w, rows_to):
        return jnp.pad(w, ((0, rows_to - w.shape[0]), (0, 0)))

    out = {"embedding": raw["embedding"], "hidden": hidden, "h_pad": h_pad,
           "num_tags": num_tags, "gru": []}

    for l, layer in enumerate(raw["gru"]):
        w_ih_f, w_hh_f, b_ih_f, b_hh_f = layer["fwd"]
        w_ih_b, w_hh_b, b_ih_b, b_hh_b = layer["bwd"]
        entry = {
            "w_hh_f": pad_rows(pad_gate_cols(w_hh_f), h_pad).astype(compute_dtype),
            "w_hh_b": pad_rows(pad_gate_cols(w_hh_b), h_pad).astype(compute_dtype),
            "b_hh_f": pad_gate_cols(b_hh_f),                                 # f32
            "b_hh_b": pad_gate_cols(b_hh_b),                                 # f32
            "b_ih_cat": jnp.concatenate(
                [pad_gate_cols(b_ih_f), pad_gate_cols(b_ih_b)], axis=1),     # (1, 6*h_pad) f32
        }
        if l == 0:
            w_cat = jnp.concatenate(
                [pad_gate_cols(w_ih_f), pad_gate_cols(w_ih_b)], axis=1)      # (E, 6*h_pad)
            entry["w_ih_cat"] = w_cat.astype(compute_dtype)
        else:
            # in_dim == 2*hidden; split rows into the part multiplying out_f vs out_b
            w_top = jnp.concatenate(
                [pad_gate_cols(w_ih_f[:hidden]), pad_gate_cols(w_ih_b[:hidden])], axis=1)
            w_bot = jnp.concatenate(
                [pad_gate_cols(w_ih_f[hidden:]), pad_gate_cols(w_ih_b[hidden:])], axis=1)
            entry["w_ih_top"] = pad_rows(w_top, h_pad).astype(compute_dtype)
            entry["w_ih_bot"] = pad_rows(w_bot, h_pad).astype(compute_dtype)
        out["gru"].append(entry)

    lw_f, lw_b = raw["lin_w"][:hidden], raw["lin_w"][hidden:]
    out["lin_w_f"] = pad_rows(jnp.pad(lw_f, ((0, 0), (0, c_pad - num_tags))),
                              h_pad).astype(compute_dtype)
    out["lin_w_b"] = pad_rows(jnp.pad(lw_b, ((0, 0), (0, c_pad - num_tags))),
                              h_pad).astype(compute_dtype)
    out["lin_b"] = jnp.pad(raw["lin_b"], ((0, 0), (0, c_pad - num_tags)),
                           constant_values=-1e30)                            # f32
    return out


if __name__ == "__main__":
    B, T = 2, 8
    VOCAB, EMB = 20, 16
    HIDDEN, NUM_LAYERS, NUM_TAGS = 32, 2, 5

    key = jax.random.PRNGKey(0)
    k_ids, k_params = jax.random.split(key)

    # token ids in [1, VOCAB); row 0 fully valid, row 1 padded with -1 at the tail
    ids = jax.random.randint(k_ids, (B, T), 1, VOCAB, dtype=jnp.int32)
    pad_mask = jnp.zeros((B, T), dtype=bool).at[1, 5:].set(True)
    x = jnp.where(pad_mask, -1, ids)

    raw_params = make_params(k_params, VOCAB, EMB, HIDDEN, NUM_LAYERS, NUM_TAGS)
    params = prepare_params(raw_params, HIDDEN, NUM_TAGS)

    out = bigru_forward(x, params, NUM_LAYERS)
    out = jax.block_until_ready(out)
    assert out.shape == (B, T, NUM_TAGS), out.shape
    assert bool(jnp.isfinite(out).all())
    print("KERNEL_OK")
</pallas_src>

<mosaic_0001>
module attributes {stable_mosaic.version = 11 : i64} {
  func.func @_matmul_bias_kernel(%arg0: i32, %arg1: i32, %arg2: memref<64x16xbf16, #tpu.memory_space<vmem>>, %arg3: memref<16x384xbf16, #tpu.memory_space<vmem>>, %arg4: memref<1x384xf32, #tpu.memory_space<vmem>>, %arg5: memref<64x384xbf16, #tpu.memory_space<vmem>>) attributes {dimension_semantics = [#tpu.dimension_semantics<parallel>, #tpu.dimension_semantics<parallel>], iteration_bounds = array<i64: 1, 2>, scalar_prefetch = 0 : i64, scratch_operands = 0 : i64, tpu.core_type = #tpu.core_type<tc>, window_params = [{transform_indices = @transform_0, window_bounds = array<i64: 64, 16>}, {transform_indices = @transform_1, window_bounds = array<i64: 16, 384>}, {transform_indices = @transform_2, window_bounds = array<i64: 1, 384>}, {transform_indices = @transform_3, window_bounds = array<i64: 64, 384>}]} {
    %c0 = arith.constant 0 : index
    %c0_0 = arith.constant 0 : index
    %0 = vector.load %arg2[%c0, %c0_0] : memref<64x16xbf16, #tpu.memory_space<vmem>>, vector<64x16xbf16>
    %c0_1 = arith.constant 0 : index
    %c0_2 = arith.constant 0 : index
    %1 = vector.load %arg3[%c0_1, %c0_2] : memref<16x384xbf16, #tpu.memory_space<vmem>>, vector<16x384xbf16>
    %cst = arith.constant dense<0.000000e+00> : vector<64x384xf32>
    %2 = tpu.matmul %0, %1, %cst {dimension_numbers = #tpu.dot_dimension_numbers<[1], [0], [0], [1], [0, 0, 1, 1], [], []>} : vector<64x16xbf16>, vector<16x384xbf16>, vector<64x384xf32> -> vector<64x384xf32>
    %c0_3 = arith.constant 0 : index
    %c0_4 = arith.constant 0 : index
    %3 = vector.load %arg4[%c0_3, %c0_4] : memref<1x384xf32, #tpu.memory_space<vmem>>, vector<1x384xf32>
    %4 = vector.broadcast %3 : vector<1x384xf32> to vector<64x384xf32>
    %5 = arith.addf %2, %4 : vector<64x384xf32>
    %6 = arith.truncf %5 : vector<64x384xf32> to vector<64x384xbf16>
    %c0_5 = arith.constant 0 : index
    %c0_6 = arith.constant 0 : index
    %7 = vector.load %arg5[%c0_5, %c0_6] : memref<64x384xbf16, #tpu.memory_space<vmem>>, vector<64x384xbf16>
    tpu.vector_store %arg5[%c0_5, %c0_6], %6 {strides = array<i32>} : memref<64x384xbf16, #tpu.memory_space<vmem>>, vector<64x384xbf16>,
    return
  }
  func.func @transform_0(%arg0: i32, %arg1: i32) -> (i32, i32) {
    %c0_i32 = arith.constant 0 : i32
    %c0_i32_0 = arith.constant 0 : i32
    return %arg0, %c0_i32 : i32, i32
  }
  func.func @transform_1(%arg0: i32, %arg1: i32) -> (i32, i32) {
    %c0_i32 = arith.constant 0 : i32
    %c0_i32_0 = arith.constant 0 : i32
    return %c0_i32, %arg1 : i32, i32
  }
  func.func @transform_2(%arg0: i32, %arg1: i32) -> (i32, i32) {
    %c0_i32 = arith.constant 0 : i32
    %c0_i32_0 = arith.constant 0 : i32
    return %c0_i32, %arg1 : i32, i32
  }
  func.func @transform_3(%arg0: i32, %arg1: i32) -> (i32, i32) {
    %c0_i32 = arith.constant 0 : i32
    return %arg0, %arg1 : i32, i32
  }
}

</mosaic_0001>

<llo_original>
// kernel: tpu_custom_call.1
$region0: #{tpu_custom_call.1}
  #allocation0 [shape = 'u32[]', space=smem, size = 0x4, offset = 0x4, fixed_abs, tag = 'smem constant byte address 0x4 - core index']
  #allocation1 [shape = 'u32[144,128]{1,0:T(1,128)}', space=vmem, size = 0x12000, scoped, tag = 'internal scratch']
  %s0 = inlined_call_operand.hbm [shape: bf16[64,16], index: 0, kind: input, shape index: {}]
  %s1 = inlined_call_operand.hbm [shape: bf16[16,768], index: 1, kind: input, shape index: {}]
  %s2 = inlined_call_operand.hbm [shape: f32[1,768], index: 2, kind: input, shape index: {}]
  %s3 = inlined_call_operand.hbm [shape: bf16[64,768], index: 3, kind: output, shape index: {}]
  %s4 = sld [smem:[#allocation0]]
  $region57: #{tpu_custom_call.1} parent=0
    _
  %s6 = ssub.s32 1, %s4
  %s7 = scalar_select 0, %s6, %s4
  $region1: #{tpu_custom_call.1} parent=0
    #allocation2 [shape = 'u8[16384]{0}', space=vmem, size = 0x4000, scoped, tag = 'input window, operand 0, single buffered']
    #allocation3 [shape = 's32[2]{0}', space=sflag, size = 0x8, scoped, tag = 'scoped memory for tpu_custom_call.1']
    #allocation4 [shape = 's32[2]{0}', space=sflag, size = 0x8, scoped, tag = 'scoped memory for tpu_custom_call.1']
    #allocation5 [shape = 'u8[24576]{0}', space=vmem, size = 0x6000, scoped, tag = 'input window, operand 1']
    #allocation6 [shape = 's32[2]{0}', space=sflag, size = 0x8, scoped, tag = 'scoped memory for tpu_custom_call.1']
    #allocation7 [shape = 'u8[3072]{0}', space=vmem, size = 0xc00, scoped, tag = 'input window, operand 2']
    #allocation8 [shape = 'u8[98304]{0}', space=vmem, size = 0x18000, scoped, tag = 'output window, operand 0']
    %8 = vsyncpa [#allocation3], 0
    %9 = vsyncpa [#allocation6], 0
    %s10 = scalar_lea.sflag [#allocation6], 1
    %11 = vsyncpa %s10, 0
    %12 = vsyncpa [#allocation4], 0
    %s13 = scalar_lea.sflag [#allocation4], 1
    %14 = vsyncpa %s13, 0
    loop: start=0, step=1, limit=4
    $region2: #{tpu_custom_call.1} parent=1 // loop_pre_header
      _
    $region3: #{tpu_custom_call.1} parent=1 // loop_header
      %s16 = sphi 0, %s20
      %p17 = scmp.ge.s32.totalorder %s16, 4
      %s23 = sphi 0, %s35
      %s24 = sphi 0, %s31
      %s25 = sphi 0, %s23
      %s26 = sphi 0, %s24
      %s27 = sphi 0, %s25
      %s28 = sphi 0, %s26
      %s38 = sphi 0, %s40
      %s41 = sphi 0, %s38
      %s42 = sphi 0, %s41
      %s58 = sphi 0, %s42
      %s64 = sphi 0, %s66
      %s67 = sphi 0, %s64
      %s68 = sphi 0, %s67
      %s84 = sphi 0, %s68
      %s90 = sphi 0, %s92
      %s93 = sphi 0, %s90
      %s94 = sphi 0, %s93
      %s110 = sphi 0, %s94
      %s118 = sphi 0, %s120
      %s121 = sphi 0, %s118
      %s122 = sphi 0, %s121
      %s138 = sphi 0, %s122
    $region4: #{tpu_custom_call.1} parent=1 // loop_header_branch
      %19 = sbr.rel (%p17) target = $region8
    $region5: #{tpu_custom_call.1} parent=1 // loop_body
      %s21 = ssub.s32 %s16, 1
      %s22 = ssub.s32 %s16, 2
      %s29 = sadd.s32 1, %s24
      %p30 = scmp.ge.s32.totalorder %s29, 2
      %s31 = scalar_select %p30, 0, %s29
      %s32 = sadd.s32 1, %s23
      %s33 = scalar_select %p30, %s32, %s23
      %p34 = scmp.ge.s32.totalorder %s33, 1
      %s35 = scalar_select %p34, 0, %s33
      %s36 = ssub.s32 %s23, %s35
      %p37 = scmp.eq.s32.totalorder %s36, 0
      %s39 = sadd.s32 %s38, 1
      %s40 = scalar_select %p37, %s38, %s39
      %p43 = pneg %p37
      %p44 = scmp.eq.s32.totalorder %s16, 1
      %p45 = por %p43, %p44
      %p46 = scmp.ne.s32.totalorder %s38, %s41
      %p47 = scmp.eq.s32.totalorder %s16, 0
      %p48 = por %p46, %p47
      %p49 = scmp.ne.s32.totalorder %s38, %s41
      %p50 = scmp.eq.s32.totalorder %s21, 1
      %p51 = por %p49, %p50
      %p52 = scmp.ne.s32.totalorder %s41, %s42
      %p53 = scmp.eq.s32.totalorder %s21, 0
      %p54 = por %p52, %p53
      %p55 = scmp.ne.s32.totalorder %s41, %s42
      %p56 = scmp.eq.s32.totalorder %s22, 1
      %p57 = por %p55, %p56
      %p59 = scmp.ne.s32.totalorder %s42, %s58
      %p60 = scmp.eq.s32.totalorder %s22, 0
      %p61 = por %p59, %p60
      %s62 = ssub.s32 %s24, %s31
      %p63 = scmp.eq.s32.totalorder %s62, 0
      %s65 = sadd.s32 %s64, 1
      %s66 = scalar_select %p63, %s64, %s65
      %p69 = pneg %p63
      %p70 = scmp.eq.s32.totalorder %s16, 1
      %p71 = por %p69, %p70
      %p72 = scmp.ne.s32.totalorder %s64, %s67
      %p73 = scmp.eq.s32.totalorder %s16, 0
      %p74 = por %p72, %p73
      %p75 = scmp.ne.s32.totalorder %s64, %s67
      %p76 = scmp.eq.s32.totalorder %s21, 1
      %p77 = por %p75, %p76
      %p78 = scmp.ne.s32.totalorder %s67, %s68
      %p79 = scmp.eq.s32.totalorder %s21, 0
      %p80 = por %p78, %p79
      %p81 = scmp.ne.s32.totalorder %s67, %s68
      %p82 = scmp.eq.s32.totalorder %s22, 1
      %p83 = por %p81, %p82
      %p85 = scmp.ne.s32.totalorder %s68, %s84
      %p86 = scmp.eq.s32.totalorder %s22, 0
      %p87 = por %p85, %p86
      %s88 = ssub.s32 %s24, %s31
      %p89 = scmp.eq.s32.totalorder %s88, 0
      %s91 = sadd.s32 %s90, 1
      %s92 = scalar_select %p89, %s90, %s91
      %p95 = pneg %p89
      %p96 = scmp.eq.s32.totalorder %s16, 1
      %p97 = por %p95, %p96
      %p98 = scmp.ne.s32.totalorder %s90, %s93
      %p99 = scmp.eq.s32.totalorder %s16, 0
      %p100 = por %p98, %p99
      %p101 = scmp.ne.s32.totalorder %s90, %s93
      %p102 = scmp.eq.s32.totalorder %s21, 1
      %p103 = por %p101, %p102
      %p104 = scmp.ne.s32.totalorder %s93, %s94
      %p105 = scmp.eq.s32.totalorder %s21, 0
      %p106 = por %p104, %p105
      %p107 = scmp.ne.s32.totalorder %s93, %s94
      %p108 = scmp.eq.s32.totalorder %s22, 1
      %p109 = por %p107, %p108
      %p111 = scmp.ne.s32.totalorder %s94, %s110
      %p112 = scmp.eq.s32.totalorder %s22, 0
      %p113 = por %p111, %p112
      %s114 = ssub.s32 %s23, %s35
      %s115 = ssub.s32 %s24, %s31
      %s116 = sor.u32 %s114, %s115
      %p117 = scmp.eq.s32.totalorder %s116, 0
      %s119 = sadd.s32 %s118, 1
      %s120 = scalar_select %p117, %s118, %s119
      %p123 = pneg %p117
      %p124 = scmp.eq.s32.totalorder %s16, 1
      %p125 = por %p123, %p124
      %p126 = scmp.ne.s32.totalorder %s118, %s121
      %p127 = scmp.eq.s32.totalorder %s16, 0
      %p128 = por %p126, %p127
      %p129 = scmp.ne.s32.totalorder %s118, %s121
      %p130 = scmp.eq.s32.totalorder %s21, 1
      %p131 = por %p129, %p130
      %p132 = scmp.ne.s32.totalorder %s121, %s122
      %p133 = scmp.eq.s32.totalorder %s21, 0
      %p134 = por %p132, %p133
      %p135 = scmp.ne.s32.totalorder %s121, %s122
      %p136 = scmp.eq.s32.totalorder %s22, 1
      %p137 = por %p135, %p136
      %p139 = scmp.ne.s32.totalorder %s122, %s138
      %p140 = scmp.eq.s32.totalorder %s22, 0
      %p141 = por %p139, %p140
      %p142 = scmp.le.s32.totalorder 1, %s16
      %p143 = scmp.lt.s32.totalorder %s16, 3
      %p144 = pnand %p142, %p143
      %p145 = pneg %p144
      // Predicated region
      $region9: #{tpu_custom_call.1} parent=5 // pred_check
        _
      $region10: #{tpu_custom_call.1} parent=5 // pred_check_branch
        %147 = sbr.rel (%p144) target = $region12
      $region11: #{tpu_custom_call.1} parent=5 // pred_region
        %s148 = ssub.s32 %s16, 1
        // Predicated region
        $region13: #{tpu_custom_call.1} parent=11 // pred_check
          %p149 = pneg %p54
        $region14: #{tpu_custom_call.1} parent=11 // pred_check_branch
          %151 = sbr.rel (%p149) target = $region16
        $region15: #{tpu_custom_call.1} parent=11 // pred_region
          %s152 = smul.u32 8, %s25
          %s154 = ssub.s32 512, 512
          %155 = vsyncadd [#allocation3], %s154
          %s156 = smul.addr %s152, 64
          %s157 = scalar_lea.hbm %s0, %s156
          %s158 = sshll.u32 [#allocation2], 4
          %s159 = int_to_ptr.vmem [resolvable:$true] %s158
          %164 = dma.hbm_to_vmem [thread:$0]  %s157, 512, %s159, [#allocation3], 64, 64, 4
        $region16: #{tpu_custom_call.1} parent=11 // pred_fallthru
          _
      $region12: #{tpu_custom_call.1} parent=5 // pred_fallthru
        _
      %p165 = scmp.lt.s32.totalorder %s16, 2
      // Predicated region
      $region17: #{tpu_custom_call.1} parent=5 // pred_check
        %p166 = pneg %p165
      $region18: #{tpu_custom_call.1} parent=5 // pred_check_branch
        %168 = sbr.rel (%p166) target = $region20
      $region19: #{tpu_custom_call.1} parent=5 // pred_region
        // Predicated region
        $region21: #{tpu_custom_call.1} parent=19 // pred_check
          %p169 = pneg %p74
        $region22: #{tpu_custom_call.1} parent=19 // pred_check_branch
          %171 = sbr.rel (%p169) target = $region24
        $region23: #{tpu_custom_call.1} parent=19 // pred_region
          %s172 = sand.u32 %s16, 1
          %s173 = scalar_lea.sflag [#allocation6], %s172
          %s174 = sand.u32 %s64, 1
          %s175 = smul.addr %s174, 24
          %s176 = scalar_lea.vmem [#allocation5], %s175
          %s177 = smul.u32 3, %s24
          %s179 = ssub.s32 384, 384
          %180 = vsyncadd %s173, %s179
          %s181 = smul.addr %s177, 64
          %s182 = scalar_lea.hbm %s1, %s181
          %s183 = sshll.u32 %s176, 4
          %s184 = int_to_ptr.vmem [resolvable:$true] %s183
          %189 = dma.hbm_to_vmem [thread:$0]  %s182, 384, %s184, %s173, 384, 192, 12
        $region24: #{tpu_custom_call.1} parent=19 // pred_fallthru
          _
        // Predicated region
        $region25: #{tpu_custom_call.1} parent=19 // pred_check
          %p190 = pneg %p100
        $region26: #{tpu_custom_call.1} parent=19 // pred_check_branch
          %192 = sbr.rel (%p190) target = $region28
        $region27: #{tpu_custom_call.1} parent=19 // pred_region
          %s193 = sand.u32 %s16, 1
          %s194 = scalar_lea.sflag [#allocation6], %s193
          %s195 = sand.u32 %s90, 1
          %s196 = smul.addr %s195, 3
          %s197 = scalar_lea.vmem [#allocation7], %s196
          %s198 = smul.u32 3, %s24
          %s200 = ssub.s32 48, 48
          %201 = vsyncadd %s194, %s200
          %s202 = smul.addr %s198, 16
          %s203 = scalar_lea.hbm %s2, %s202
          %s205 = sshll.u32 %s197, 4
          %s206 = int_to_ptr.vmem [resolvable:$true] %s205
          %208 = dma.hbm_to_vmem [thread:$0]  %s203, 48, %s206, %s194
        $region28: #{tpu_custom_call.1} parent=19 // pred_fallthru
          _
      $region20: #{tpu_custom_call.1} parent=5 // pred_fallthru
        _
      %p209 = scmp.le.s32.totalorder 1, %s16
      %p210 = scmp.lt.s32.totalorder %s16, 3
      %p211 = pnand %p209, %p210
      %p212 = pneg %p211
      // Predicated region
      $region29: #{tpu_custom_call.1} parent=5 // pred_check
        _
      $region30: #{tpu_custom_call.1} parent=5 // pred_check_branch
        %214 = sbr.rel (%p211) target = $region32
      $region31: #{tpu_custom_call.1} parent=5 // pred_region
        %s215 = ssub.s32 %s16, 1
        // Predicated region
        $region33: #{tpu_custom_call.1} parent=31 // pred_check
          %p216 = pneg %p54
        $region34: #{tpu_custom_call.1} parent=31 // pred_check_branch
          %218 = sbr.rel (%p216) target = $region36
        $region35: #{tpu_custom_call.1} parent=31 // pred_region
          %219 = dma.done [#allocation3], 512
        $region36: #{tpu_custom_call.1} parent=31 // pred_fallthru
          _
        %s220 = sand.u32 %s21, 1
        %s221 = scalar_lea.sflag [#allocation6], %s220
        %s222 = sand.u32 %s67, 1
        %s223 = smul.addr %s222, 24
        %s224 = scalar_lea.vmem [#allocation5], %s223
        // Predicated region
        $region37: #{tpu_custom_call.1} parent=31 // pred_check
          %p225 = pneg %p80
        $region38: #{tpu_custom_call.1} parent=31 // pred_check_branch
          %227 = sbr.rel (%p225) target = $region40
        $region39: #{tpu_custom_call.1} parent=31 // pred_region
          %228 = dma.done %s221, 384
        $region40: #{tpu_custom_call.1} parent=31 // pred_fallthru
          _
        %s229 = sand.u32 %s21, 1
        %s230 = scalar_lea.sflag [#allocation6], %s229
        %s231 = sand.u32 %s93, 1
        %s232 = smul.addr %s231, 3
        %s233 = scalar_lea.vmem [#allocation7], %s232
        // Predicated region
        $region41: #{tpu_custom_call.1} parent=31 // pred_check
          %p234 = pneg %p106
        $region42: #{tpu_custom_call.1} parent=31 // pred_check_branch
          %236 = sbr.rel (%p234) target = $region44
        $region43: #{tpu_custom_call.1} parent=31 // pred_region
          %237 = dma.done %s230, 48
        $region44: #{tpu_custom_call.1} parent=31 // pred_fallthru
          _
        %p238 = pneg %p54
        %p239 = pneg %p51
        %s240 = sand.u32 %s21, 1
        %s241 = scalar_lea.sflag [#allocation6], %s240
        %s242 = sand.u32 %s67, 1
        %s243 = smul.addr %s242, 24
        %s244 = scalar_lea.vmem [#allocation5], %s243
        %p245 = pneg %p80
        %p246 = pneg %p77
        %s247 = sand.u32 %s21, 1
        %s248 = scalar_lea.sflag [#allocation6], %s247
        %s249 = sand.u32 %s93, 1
        %s250 = smul.addr %s249, 3
        %s251 = scalar_lea.vmem [#allocation7], %s250
        %p252 = pneg %p106
        %p253 = pneg %p103
        %p254 = pneg %p134
        %p255 = pneg %p131
        %s256 = sand.u32 %s121, 1
        %s257 = scalar_lea.sflag [#allocation4], %s256
        %s258 = sand.u32 %s121, 1
        %s259 = smul.addr %s258, 96
        %s260 = scalar_lea.vmem [#allocation8], %s259
        %s261 = smul.u32 8, %s25
        %s262 = smul.u32 3, %s26
        %s263 = smul.u32 3, %s26
        %s264 = smul.u32 8, %s25
        %s265 = smul.u32 3, %s26
        %v267 = vld [vmem:[#allocation2] sm:$0xf]
        %v268 = vld [vmem:[#allocation2 + $0x4] sm:$0xf]
        %v269 = vld [vmem:[#allocation2 + $0x8] sm:$0xf]
        %v270 = vld [vmem:[#allocation2 + $0xc] sm:$0xf]
        %v271 = vld [vmem:[#allocation2 + $0x10] sm:$0xf]
        %v272 = vld [vmem:[#allocation2 + $0x14] sm:$0xf]
        %v273 = vld [vmem:[#allocation2 + $0x18] sm:$0xf]
        %v274 = vld [vmem:[#allocation2 + $0x1c] sm:$0xf]
        %v275 = vld [vmem:[%s224] sm:$0xff]
        %v276 = vld [vmem:[%s224 + $0x8] sm:$0xf]
        %v277 = vld [vmem:[%s224 + $0xc] sm:$0xff]
        %v278 = vld [vmem:[%s224 + $0x14] sm:$0xf]
        %v279 = vld [vmem:[%s233] sm:$0x7]
        %v281 = vlaneseq
        %v282 = vshrl.u32 %v281, 7
        %v283 = vsub.s32 0, %v282
        %v284 = vrot.slane %v279, %v283
        %v285 = vlaneseq
        %v286 = vshrl.u32 %v285, 7
        %v287 = vsub.s32 1, %v286
        %v288 = vrot.slane %v279, %v287
        %v289 = vlaneseq
        %v290 = vshrl.u32 %v289, 7
        %v291 = vsub.s32 2, %v290
        %v292 = vrot.slane %v279, %v291
        %v304 = vunpack.c.l.b16 %v267
        %v305 = vunpack.c.l.b16 %v268
        %v306 = vunpack.c.l.b16 %v269
        %v307 = vunpack.c.l.b16 %v270
        %v308 = vunpack.c.l.b16 %v271
        %v309 = vunpack.c.l.b16 %v272
        %v310 = vunpack.c.l.b16 %v273
        %v311 = vunpack.c.l.b16 %v274
        %v312 = vpack.c.b16 %v305, %v304
        %v313 = vpack.c.b16 %v307, %v306
        %v314 = vpack.c.b16 %v309, %v308
        %v315 = vpack.c.b16 %v311, %v310
        %v320 = vunpack.c.l.b16 %v275
        %v321 = vunpack.c.h.b16 %v275
        %v322 = vunpack.c.l.b16 %v276
        %v323 = vunpack.c.l.b16 %v277
        %v324 = vunpack.c.h.b16 %v277
        %v325 = vunpack.c.l.b16 %v278
        %v326 = vpack.c.b16 %v323, %v320
        %v327 = vpack.c.b16 %v324, %v321
        %v328 = vpack.c.b16 %v325, %v322
        %vm332 = vcmask 130048
        %v334 = vsel %vm332, %v312, 0
        %v337 = vsel %vm332, %v313, 0
        %v340 = vsel %vm332, %v314, 0
        %v343 = vsel %vm332, %v315, 0
        %345 = vmatprep.subr.bf16.mxu0 %v327
        %346 = vmatpush1.bf16.msra.mxu0 %v326
        %347 = vmatprep.subr.bf16.mxu0 0
        %348 = vmatpush1.bf16.msra.mxu0 0
        %349 = vmatprep.subr.bf16.mxu0 0
        %350 = vmatpush1.bf16.msra.mxu0 0
        %351 = vmatprep.subr.bf16.mxu0 0
        %352 = vmatpush1.bf16.msra.mxu0 0
        %353 = vmatprep.subr.bf16.mxu0 0
        %354 = vmatpush1.bf16.msra.mxu0 0
        %355 = vmatprep.subr.bf16.mxu0 0
        %356 = vmatpush1.bf16.msra.mxu0 0
        %357 = vmatprep.subr.bf16.mxu0 0
        %358 = vmatpush1.bf16.msra.mxu0 0
        %359 = vmatprep.subr.bf16.mxu0 0
        %360 = vmatpush1.bf16.msra.mxu0 0
        %361 = vmatprep.subr.bf16.mxu0 0
        %362 = vmatpush1.bf16.msra.mxu0 0
        %363 = vmatprep.subr.bf16.mxu0 0
        %364 = vmatpush1.bf16.msra.mxu0 0
        %365 = vmatprep.subr.bf16.mxu0 0
        %366 = vmatpush1.bf16.msra.mxu0 0
        %367 = vmatprep.subr.bf16.mxu0 0
        %368 = vmatpush1.bf16.msra.mxu0 0
        %369 = vmatprep.subr.bf16.mxu0 0
        %370 = vmatpush1.bf16.msra.mxu0 0
        %371 = vmatprep.subr.bf16.mxu0 0
        %372 = vmatpush1.bf16.msra.mxu0 0
        %373 = vmatprep.subr.bf16.mxu0 0
        %374 = vmatpush1.bf16.msra.mxu0 0
        %375 = vmatprep.subr.bf16.mxu0 0
        %376 = vmatpush1.bf16.msra.mxu0 0
        %377 = vmatprep.mubr.bf16.mxu0 0
        %378 = vmatmul.mubr.bf16.gmra.mrb[0].mxu0 %v334
        %v379 = vpop.f32.mrb[0].mxu0
        %v380 = vadd.f32 %v284, %v379
        %v381 = vpop.f32.mrb[0].mxu0
        %v382 = vadd.f32 %v288, %v381
        %v383 = vpop.f32.mrb[0].mxu0
        %v384 = vadd.f32 %v284, %v383
        %v385 = vpop.f32.mrb[0].mxu0
        %v386 = vadd.f32 %v288, %v385
        %387 = vmatprep.mubr.bf16.mxu0 0
        %388 = vmatmul.mubr.bf16.gmra.mrb[0].mxu0 %v337
        %v389 = vpop.f32.mrb[0].mxu0
        %v390 = vadd.f32 %v284, %v389
        %v391 = vpop.f32.mrb[0].mxu0
        %v392 = vadd.f32 %v288, %v391
        %v393 = vpop.f32.mrb[0].mxu0
        %v394 = vadd.f32 %v284, %v393
        %v395 = vpop.f32.mrb[0].mxu0
        %v396 = vadd.f32 %v288, %v395
        %397 = vmatprep.mubr.bf16.mxu0 0
        %398 = vmatmul.mubr.bf16.gmra.mrb[0].mxu0 %v340
        %v399 = vpop.f32.mrb[0].mxu0
        %v400 = vadd.f32 %v284, %v399
        %v401 = vpop.f32.mrb[0].mxu0
        %v402 = vadd.f32 %v288, %v401
        %v403 = vpop.f32.mrb[0].mxu0
        %v404 = vadd.f32 %v284, %v403
        %v405 = vpop.f32.mrb[0].mxu0
        %v406 = vadd.f32 %v288, %v405
        %407 = vmatprep.mubr.bf16.mxu0 0
        %408 = vmatmul.mubr.bf16.gmra.mrb[0].mxu0 %v343
        %v409 = vpop.f32.mrb[0].mxu0
        %v410 = vadd.f32 %v284, %v409
        %v411 = vpop.f32.mrb[0].mxu0
        %v412 = vadd.f32 %v288, %v411
        %v413 = vpop.f32.mrb[0].mxu0
        %v414 = vadd.f32 %v284, %v413
        %v415 = vpop.f32.mrb[0].mxu0
        %v416 = vadd.f32 %v288, %v415
        %417 = vdwg.mxu0
        %418 = vmatprep.subr.bf16.mxu0 0
        %419 = vmatpush1.bf16.msra.mxu0 %v328
        %420 = vmatprep.subr.bf16.mxu0 0
        %421 = vmatpush1.bf16.msra.mxu0 0
        %422 = vmatprep.subr.bf16.mxu0 0
        %423 = vmatpush1.bf16.msra.mxu0 0
        %424 = vmatprep.subr.bf16.mxu0 0
        %425 = vmatpush1.bf16.msra.mxu0 0
        %426 = vmatprep.subr.bf16.mxu0 0
        %427 = vmatpush1.bf16.msra.mxu0 0
        %428 = vmatprep.subr.bf16.mxu0 0
        %429 = vmatpush1.bf16.msra.mxu0 0
        %430 = vmatprep.subr.bf16.mxu0 0
        %431 = vmatpush1.bf16.msra.mxu0 0
        %432 = vmatprep.subr.bf16.mxu0 0
        %433 = vmatpush1.bf16.msra.mxu0 0
        %434 = vmatprep.subr.bf16.mxu0 0
        %435 = vmatpush1.bf16.msra.mxu0 0
        %436 = vmatprep.subr.bf16.mxu0 0
        %437 = vmatpush1.bf16.msra.mxu0 0
        %438 = vmatprep.subr.bf16.mxu0 0
        %439 = vmatpush1.bf16.msra.mxu0 0
        %440 = vmatprep.subr.bf16.mxu0 0
        %441 = vmatpush1.bf16.msra.mxu0 0
        %442 = vmatprep.subr.bf16.mxu0 0
        %443 = vmatpush1.bf16.msra.mxu0 0
        %444 = vmatprep.subr.bf16.mxu0 0
        %445 = vmatpush1.bf16.msra.mxu0 0
        %446 = vmatprep.subr.bf16.mxu0 0
        %447 = vmatpush1.bf16.msra.mxu0 0
        %448 = vmatprep.subr.bf16.mxu0 0
        %449 = vmatpush1.bf16.msra.mxu0 0
        %450 = vmatprep.mubr.bf16.mxu0 0
        %451 = vmatmul.mubr.bf16.gmra.mrb[0].mxu0 %v334
        %v452 = vpop.f32.mrb[0].mxu0
        %v453 = vadd.f32 %v292, %v452
        %v454 = vpop.f32.mrb[0].mxu0
        %v455 = vpop.f32.mrb[0].mxu0
        %v456 = vadd.f32 %v292, %v455
        %v457 = vpop.f32.mrb[0].mxu0
        %458 = vmatprep.mubr.bf16.mxu0 0
        %459 = vmatmul.mubr.bf16.gmra.mrb[0].mxu0 %v337
        %v460 = vpop.f32.mrb[0].mxu0
        %v461 = vadd.f32 %v292, %v460
        %v462 = vpop.f32.mrb[0].mxu0
        %v463 = vpop.f32.mrb[0].mxu0
        %v464 = vadd.f32 %v292, %v463
        %v465 = vpop.f32.mrb[0].mxu0
        %466 = vmatprep.mubr.bf16.mxu0 0
        %467 = vmatmul.mubr.bf16.gmra.mrb[0].mxu0 %v340
        %v468 = vpop.f32.mrb[0].mxu0
        %v469 = vadd.f32 %v292, %v468
        %v470 = vpop.f32.mrb[0].mxu0
        %v471 = vpop.f32.mrb[0].mxu0
        %v472 = vadd.f32 %v292, %v471
        %v473 = vpop.f32.mrb[0].mxu0
        %474 = vmatprep.mubr.bf16.mxu0 0
        %475 = vmatmul.mubr.bf16.gmra.mrb[0].mxu0 %v343
        %v476 = vpop.f32.mrb[0].mxu0
        %v477 = vadd.f32 %v292, %v476
        %v478 = vpop.f32.mrb[0].mxu0
        %v479 = vpop.f32.mrb[0].mxu0
        %v480 = vadd.f32 %v292, %v479
        %v481 = vpop.f32.mrb[0].mxu0
        %482 = vdwg.mxu0
        %v483 = vpack.c.bf16 %v384, %v380
        %v484 = vpack.c.bf16 %v386, %v382
        %v485 = vpack.c.bf16 %v456, %v453
        %v486 = vpack.c.bf16 %v394, %v390
        %v487 = vpack.c.bf16 %v396, %v392
        %v488 = vpack.c.bf16 %v464, %v461
        %v489 = vpack.c.bf16 %v404, %v400
        %v490 = vpack.c.bf16 %v406, %v402
        %v491 = vpack.c.bf16 %v472, %v469
        %v492 = vpack.c.bf16 %v414, %v410
        %v493 = vpack.c.bf16 %v416, %v412
        %v494 = vpack.c.bf16 %v480, %v477
        %v507 = vunpack.c.l.b16 %v483
        %v508 = vunpack.c.l.b16 %v484
        %v509 = vunpack.c.l.b16 %v485
        %v510 = vunpack.c.h.b16 %v483
        %v511 = vunpack.c.h.b16 %v484
        %v512 = vunpack.c.h.b16 %v485
        %v513 = vunpack.c.l.b16 %v486
        %v514 = vunpack.c.l.b16 %v487
        %v515 = vunpack.c.l.b16 %v488
        %v516 = vunpack.c.h.b16 %v486
        %v517 = vunpack.c.h.b16 %v487
        %v518 = vunpack.c.h.b16 %v488
        %v519 = vunpack.c.l.b16 %v489
        %v520 = vunpack.c.l.b16 %v490
        %v521 = vunpack.c.l.b16 %v491
        %v522 = vunpack.c.h.b16 %v489
        %v523 = vunpack.c.h.b16 %v490
        %v524 = vunpack.c.h.b16 %v491
        %v525 = vunpack.c.l.b16 %v492
        %v526 = vunpack.c.l.b16 %v493
        %v527 = vunpack.c.l.b16 %v494
        %v528 = vunpack.c.h.b16 %v492
        %v529 = vunpack.c.h.b16 %v493
        %v530 = vunpack.c.h.b16 %v494
        %v531 = vpack.c.b16 %v508, %v507
        %v532 = vpack.c.b16 %v509, %v509
        %v533 = vpack.c.b16 %v511, %v510
        %v534 = vpack.c.b16 %v512, %v512
        %v535 = vpack.c.b16 %v514, %v513
        %v536 = vpack.c.b16 %v515, %v515
        %v537 = vpack.c.b16 %v517, %v516
        %v538 = vpack.c.b16 %v518, %v518
        %v539 = vpack.c.b16 %v520, %v519
        %v540 = vpack.c.b16 %v521, %v521
        %v541 = vpack.c.b16 %v523, %v522
        %v542 = vpack.c.b16 %v524, %v524
        %v543 = vpack.c.b16 %v526, %v525
        %v544 = vpack.c.b16 %v527, %v527
        %v545 = vpack.c.b16 %v529, %v528
        %v546 = vpack.c.b16 %v530, %v530
        %563 = vst [vmem:[%s260] sm:$0xff] %v531
        %564 = vst [vmem:[%s260 + $0x8] sm:$0xf] %v532
        %565 = vst [vmem:[%s260 + $0xc] sm:$0xff] %v533
        %566 = vst [vmem:[%s260 + $0x14] sm:$0xf] %v534
        %567 = vst [vmem:[%s260 + $0x18] sm:$0xff] %v535
        %568 = vst [vmem:[%s260 + $0x20] sm:$0xf] %v536
        %569 = vst [vmem:[%s260 + $0x24] sm:$0xff] %v537
        %570 = vst [vmem:[%s260 + $0x2c] sm:$0xf] %v538
        %571 = vst [vmem:[%s260 + $0x30] sm:$0xff] %v539
        %572 = vst [vmem:[%s260 + $0x38] sm:$0xf] %v540
        %573 = vst [vmem:[%s260 + $0x3c] sm:$0xff] %v541
        %574 = vst [vmem:[%s260 + $0x44] sm:$0xf] %v542
        %575 = vst [vmem:[%s260 + $0x48] sm:$0xff] %v543
        %576 = vst [vmem:[%s260 + $0x50] sm:$0xf] %v544
        %577 = vst [vmem:[%s260 + $0x54] sm:$0xff] %v545
        %578 = vst [vmem:[%s260 + $0x5c] sm:$0xf] %v546
        %s579 = sand.u32 %s121, 1
        %s580 = scalar_lea.sflag [#allocation4], %s579
        %s581 = sand.u32 %s121, 1
        %s582 = smul.addr %s581, 96
        %s583 = scalar_lea.vmem [#allocation8], %s582
        // Predicated region
        $region45: #{tpu_custom_call.1} parent=31 // pred_check
          %p584 = pneg %p131
        $region46: #{tpu_custom_call.1} parent=31 // pred_check_branch
          %586 = sbr.rel (%p584) target = $region48
        $region47: #{tpu_custom_call.1} parent=31 // pred_region
          %s587 = smul.u32 8, %s25
          %s588 = smul.u32 3, %s26
          %s590 = ssub.s32 1536, 1536
          %591 = vsyncadd %s580, %s590
          %s592 = smul.addr %s587, 6
          %s593 = sadd.s32 %s588, %s592
          %s594 = smul.addr %s593, 64
          %s595 = scalar_lea.hbm %s3, %s594
          %s596 = sshll.u32 %s583, 4
          %s597 = int_to_ptr.vmem [resolvable:$true] %s596
          %602 = dma.vmem_to_hbm [thread:$0]  %s597, 1536, %s595, %s580, 192, 384, 12
        $region48: #{tpu_custom_call.1} parent=31 // pred_fallthru
          _
      $region32: #{tpu_custom_call.1} parent=5 // pred_fallthru
        _
      %p603 = scmp.le.s32.totalorder 2, %s16
      // Predicated region
      $region49: #{tpu_custom_call.1} parent=5 // pred_check
        %p604 = pneg %p603
      $region50: #{tpu_custom_call.1} parent=5 // pred_check_branch
        %606 = sbr.rel (%p604) target = $region52
      $region51: #{tpu_custom_call.1} parent=5 // pred_region
        %s607 = ssub.s32 %s16, 2
        // Predicated region
        $region53: #{tpu_custom_call.1} parent=51 // pred_check
          %p608 = pneg %p137
        $region54: #{tpu_custom_call.1} parent=51 // pred_check_branch
          %610 = sbr.rel (%p608) target = $region56
        $region55: #{tpu_custom_call.1} parent=51 // pred_region
          %s611 = sand.u32 %s122, 1
          %s612 = scalar_lea.sflag [#allocation4], %s611
          %s613 = sand.u32 %s122, 1
          %s614 = smul.addr %s613, 96
          %s615 = scalar_lea.vmem [#allocation8], %s614
          %616 = dma.done %s612, 1536
        $region56: #{tpu_custom_call.1} parent=51 // pred_fallthru
          _
      $region52: #{tpu_custom_call.1} parent=5 // pred_fallthru
        _
    $region6: #{tpu_custom_call.1} parent=1 // loop_footer
      %s20 = sadd.s32 1, %s16
    $region7: #{tpu_custom_call.1} parent=1 // loop_footer_branch
      %15 = sbr.rel target = $region3
    $region8: #{tpu_custom_call.1} parent=1 // loop_exit
      _
    %617 = vsyncpa [#allocation3], 1
    %s618 = scalar_lea.sflag [#allocation3], 1
    %619 = vsyncpa %s618, 1
    %620 = vsyncpa [#allocation6], 1
    %s621 = scalar_lea.sflag [#allocation6], 1
    %622 = vsyncpa %s621, 1
    %623 = vsyncpa [#allocation4], 1
    %s624 = scalar_lea.sflag [#allocation4], 1
    %625 = vsyncpa %s624, 1

</llo_original>
